<compile_context>
chip_gen: v7x
topology: tpu7x:2x2x1
jax: 0.10.0
libtpu: 0.0.40
codegen_flags: <defaults>
</compile_context>

<pallas_src>
import functools

import jax
import jax.numpy as jnp
from jax.experimental import pallas as pl
from jax.experimental.pallas import tpu as pltpu


def _round_up(x, m):
    return ((x + m - 1) // m) * m


def _ce_kernel(logits_ref, targets_ref, out_ref, *, batch_size, block_rows):
    """Per-tile partial sum of -log_softmax(x)[r, t_r] over valid rows.

    logits_ref : (TB, K) native dtype (bf16/f32), VMEM
    targets_ref: (TB, 1) int32, VMEM
    out_ref    : (1, 1)  f32 partial sum, SMEM
    """
    i = pl.program_id(0)

    x = logits_ref[...]                                            # (TB, K)
    t = targets_ref[...]                                           # (TB, 1) int32

    # Fused two-pass formulation (max pass, then one shared xm pass):
    #   loss = (m + log s) - x_t = log(s) - (x_t - m) = log(s) - tgt_sub
    m = jnp.max(x, axis=1, keepdims=True)                          # (TB, 1)
    xm = x - m                                                     # (TB, K) native dtype
    classes = jax.lax.broadcasted_iota(jnp.int32, xm.shape, 1)     # (TB, K)
    sel = classes == t                                             # (TB, K)

    # f32 accumulation for both reductions (accuracy with bf16 inputs).
    s = jnp.sum(jnp.exp(xm).astype(jnp.float32), axis=1, keepdims=True)
    tgt_sub = jnp.sum(
        jnp.where(sel, xm, jnp.zeros_like(xm)).astype(jnp.float32),
        axis=1, keepdims=True)

    loss_row = jnp.log(s) - tgt_sub                                # (TB, 1) f32

    # Mask rows past the true batch size (ragged / oversized tile padding;
    # where() does not propagate NaN/Inf from the unselected padded rows).
    row = jax.lax.broadcasted_iota(jnp.int32, loss_row.shape, 0)
    valid = (i * block_rows + row) < batch_size
    out_ref[0, 0] = jnp.sum(jnp.where(valid, loss_row, 0.0))


class CrossEntropyLoss:
    """Pallas TPU port of the reference module (forward pass)."""

    def __init__(self, num_classes, epsilon=0.1, use_gpu=True, label_smooth=True):
        self.num_classes = num_classes
        self.epsilon = epsilon if label_smooth else 0  # kept for parity; unused in forward
        self.use_gpu = use_gpu

    def __call__(self, inputs, targets):
        # inputs: (B, K) float (f32 or bf16); targets: (B,) int
        B, K = inputs.shape
        assert K == self.num_classes

        # Keep bf16 / f32 in their native dtype end-to-end (bf16 halves HBM
        # bytes and VALU pressure on v6e/v7x); anything else is upcast to f32.
        if inputs.dtype not in (jnp.float32, jnp.bfloat16):
            inputs = inputs.astype(jnp.float32)
        itemsize = jnp.dtype(inputs.dtype).itemsize

        # Generation-aware VMEM budgeting.
        try:
            vmem_cap = int(pltpu.get_tpu_info().vmem_capacity_bytes)
        except Exception:
            vmem_cap = 64 * 1024 * 1024  # conservative: v7x per-TC VMEM

        # Sublane packing factor: 8 rows for f32, 16 for bf16, 32 for int8/fp8.
        pack = max(8, 32 // itemsize)

        # Logits tile ~ VMEM/8 (8 MiB on v7x, 16 MiB on v5e/v6e): big enough to
        # sit on the HBM-roofline plateau, small enough that two double-buffered
        # tiles + targets + scratch stay well inside the scoped VMEM limit.
        tile_budget = min(16 * 1024 * 1024, max(4 * 1024 * 1024, vmem_cap // 8))
        bytes_per_row = max(K * itemsize, 1)
        tb = max(pack, (tile_budget // bytes_per_row) // pack * pack)
        tb = min(tb, _round_up(B, pack))
        # Ensure >= 2 tiles when B allows so the "parallel" batch axis shards
        # across both TensorCores on v7x (only a ~0.35us extra step elsewhere).
        tb = min(tb, max(pack, _round_up(pl.cdiv(B, 2), pack)))
        num_tiles = pl.cdiv(B, tb)

        tile_bytes = tb * K * itemsize
        vmem_limit = max(32 * 1024 * 1024, 3 * tile_bytes + (4 << 20))
        vmem_limit = min(vmem_limit, max(vmem_cap - (16 << 20), 32 << 20))

        targets_2d = targets.astype(jnp.int32).reshape(B, 1)

        kernel = functools.partial(_ce_kernel, batch_size=B, block_rows=tb)

        cost = pl.CostEstimate(
            flops=6 * B * K,
            transcendentals=B * K,
            bytes_accessed=B * K * itemsize + B * 4 + num_tiles * 4,
        )

        partials = pl.pallas_call(
            kernel,
            out_shape=jax.ShapeDtypeStruct((num_tiles, 1), jnp.float32),
            grid=(num_tiles,),
            in_specs=[
                pl.BlockSpec((tb, K), lambda i: (i, 0)),
                pl.BlockSpec((tb, 1), lambda i: (i, 0)),
            ],
            out_specs=pl.BlockSpec((1, 1), lambda i: (i, 0),
                                   memory_space=pltpu.SMEM),
            compiler_params=pltpu.CompilerParams(
                dimension_semantics=("parallel",),
                vmem_limit_bytes=int(vmem_limit),
            ),
            cost_estimate=cost,
        )(inputs, targets_2d)

        # Reduce per-tile partials; divide by the TRUE batch size.
        return jnp.sum(partials) / jnp.float32(B)


def _reference_loss(logits, labels, num_classes):
    log_probs = jax.nn.log_softmax(logits.astype(jnp.float32), axis=1)
    onehot = jax.nn.one_hot(labels, num_classes, dtype=jnp.float32)
    return jnp.sum(jnp.mean(-onehot * log_probs, axis=0))


if __name__ == "__main__":
    key = jax.random.PRNGKey(0)

    # --- Main check: small shapes consistent with the module (f32) ---
    batch, num_classes = 8, 32
    k1, k2 = jax.random.split(key)
    logits = jax.random.normal(k1, (batch, num_classes), dtype=jnp.float32)
    labels = jax.random.randint(k2, (batch,), 0, num_classes, dtype=jnp.int32)

    loss_fn = CrossEntropyLoss(num_classes=num_classes, epsilon=0.1)
    loss = loss_fn(logits, labels)
    jax.block_until_ready(loss)
    ref = _reference_loss(logits, labels, num_classes)
    assert jnp.allclose(loss, ref, atol=1e-5, rtol=1e-5), (loss, ref)

    # --- Ragged-batch check: B not a multiple of the tile (exercises masking) ---
    batch2 = 13
    k3, k4 = jax.random.split(k2)
    logits2 = jax.random.normal(k3, (batch2, num_classes), dtype=jnp.float32)
    labels2 = jax.random.randint(k4, (batch2,), 0, num_classes, dtype=jnp.int32)
    loss2 = loss_fn(logits2, labels2)
    jax.block_until_ready(loss2)
    ref2 = _reference_loss(logits2, labels2, num_classes)
    assert jnp.allclose(loss2, ref2, atol=1e-5, rtol=1e-5), (loss2, ref2)

    # --- bf16 input path (native-dtype VALU compute, f32 accumulation) ---
    batch3, num_classes3 = 24, 48
    k5, k6 = jax.random.split(k4)
    logits3 = jax.random.normal(k5, (batch3, num_classes3), dtype=jnp.float32)
    labels3 = jax.random.randint(k6, (batch3,), 0, num_classes3, dtype=jnp.int32)
    loss_fn3 = CrossEntropyLoss(num_classes=num_classes3, epsilon=0.1)
    loss3 = loss_fn3(logits3.astype(jnp.bfloat16), labels3)
    jax.block_until_ready(loss3)
    ref3 = _reference_loss(logits3, labels3, num_classes3)
    assert jnp.allclose(loss3, ref3, atol=5e-2, rtol=5e-2), (loss3, ref3)

    print("KERNEL_OK")
</pallas_src>

<mosaic_0001>
module attributes {stable_mosaic.version = 11 : i64} {
  func.func @_ce_kernel(%arg0: i32, %arg1: memref<8x32xf32, #tpu.memory_space<vmem>>, %arg2: memref<8x1xi32, #tpu.memory_space<vmem>>, %arg3: memref<1x1xf32, #tpu.memory_space<smem>>) attributes {dimension_semantics = [#tpu.dimension_semantics<parallel>], iteration_bounds = array<i64: 1>, scalar_prefetch = 0 : i64, scratch_operands = 0 : i64, tpu.core_type = #tpu.core_type<tc>, window_params = [{transform_indices = @transform_0, window_bounds = array<i64: 8, 32>}, {transform_indices = @transform_1, window_bounds = array<i64: 8, 1>}, {transform_indices = @transform_2, window_bounds = array<i64: 1, 1>}]} {
    %c0 = arith.constant 0 : index
    %c0_0 = arith.constant 0 : index
    %0 = vector.load %arg1[%c0, %c0_0] : memref<8x32xf32, #tpu.memory_space<vmem>>, vector<8x32xf32>
    %c0_1 = arith.constant 0 : index
    %c0_2 = arith.constant 0 : index
    %1 = vector.load %arg2[%c0_1, %c0_2] : memref<8x1xi32, #tpu.memory_space<vmem>>, vector<8x1xi32>
    %cst = arith.constant dense<0xFF800000> : vector<8xf32>
    %2 = vector.multi_reduction <maximumf>, %0, %cst [1] : vector<8x32xf32> to vector<8xf32>
    %3 = vector.shape_cast %2 : vector<8xf32> to vector<8x1xf32>
    %4 = vector.broadcast %3 : vector<8x1xf32> to vector<8x32xf32>
    %5 = arith.subf %0, %4 : vector<8x32xf32>
    %6 = tpu.iota {dimensions = array<i32: 1>} : vector<8x32xi32>
    %7 = vector.broadcast %1 : vector<8x1xi32> to vector<8x32xi32>
    %8 = arith.cmpi eq, %6, %7 : vector<8x32xi32>
    %9 = math.exp %5 : vector<8x32xf32>
    %cst_3 = arith.constant dense<0.000000e+00> : vector<8xf32>
    %10 = vector.multi_reduction <add>, %9, %cst_3 [1] : vector<8x32xf32> to vector<8xf32>
    %11 = vector.shape_cast %10 : vector<8xf32> to vector<8x1xf32>
    %cst_4 = arith.constant 0.000000e+00 : f32
    %12 = vector.broadcast %cst_4 : f32 to vector<8x32xf32>
    %13 = arith.select %8, %5, %12 : vector<8x32xi1>, vector<8x32xf32>
    %cst_5 = arith.constant dense<0.000000e+00> : vector<8xf32>
    %14 = vector.multi_reduction <add>, %13, %cst_5 [1] : vector<8x32xf32> to vector<8xf32>
    %15 = vector.shape_cast %14 : vector<8xf32> to vector<8x1xf32>
    %16 = math.log %11 : vector<8x1xf32>
    %17 = arith.subf %16, %15 : vector<8x1xf32>
    %18 = tpu.iota {dimensions = array<i32: 0>} : vector<8x1xi32>
    %c8_i32 = arith.constant 8 : i32
    %19 = arith.muli %arg0, %c8_i32 : i32
    %20 = vector.broadcast %19 : i32 to vector<8x1xi32>
    %21 = arith.addi %20, %18 : vector<8x1xi32>
    %c8_i32_6 = arith.constant 8 : i32
    %22 = vector.broadcast %c8_i32_6 : i32 to vector<8x1xi32>
    %23 = arith.cmpi slt, %21, %22 : vector<8x1xi32>
    %cst_7 = arith.constant 0.000000e+00 : f32
    %24 = vector.broadcast %cst_7 : f32 to vector<8x1xf32>
    %25 = arith.select %23, %17, %24 : vector<8x1xi1>, vector<8x1xf32>
    %26 = vector.shape_cast %25 : vector<8x1xf32> to vector<1x8x1xf32>
    %cst_8 = arith.constant dense<0.000000e+00> : vector<1xf32>
    %27 = vector.multi_reduction <add>, %26, %cst_8 [1, 2] : vector<1x8x1xf32> to vector<1xf32>
    %28 = vector.shape_cast %27 : vector<1xf32> to vector<1x1x1xf32>
    %29 = vector.extract %28[0, 0, 0] : f32 from vector<1x1x1xf32>
    %c0_9 = arith.constant 0 : index
    %c0_10 = arith.constant 0 : index
    %30 = memref.load %arg3[%c0_9, %c0_10] : memref<1x1xf32, #tpu.memory_space<smem>>
    memref.store %29, %arg3[%c0_9, %c0_10] : memref<1x1xf32, #tpu.memory_space<smem>>
    return
  }
  func.func @transform_0(%arg0: i32) -> (i32, i32) {
    %c0_i32 = arith.constant 0 : i32
    %c0_i32_0 = arith.constant 0 : i32
    return %arg0, %c0_i32 : i32, i32
  }
  func.func @transform_1(%arg0: i32) -> (i32, i32) {
    %c0_i32 = arith.constant 0 : i32
    %c0_i32_0 = arith.constant 0 : i32
    return %arg0, %c0_i32 : i32, i32
  }
  func.func @transform_2(%arg0: i32) -> (i32, i32) {
    %c0_i32 = arith.constant 0 : i32
    %c0_i32_0 = arith.constant 0 : i32
    return %arg0, %c0_i32 : i32, i32
  }
}

</mosaic_0001>

<llo_original>
// kernel: tpu_custom_call.1
$region0: #{tpu_custom_call.1}
  #allocation0 [shape = 'u32[]', space=smem, size = 0x4, offset = 0x4, fixed_abs, tag = 'smem constant byte address 0x4 - core index']
  #allocation1 [shape = 'u32[144,128]{1,0:T(1,128)}', space=vmem, size = 0x12000, scoped, tag = 'internal scratch']
  %s0 = inlined_call_operand.vmem [shape: f32[8,32], index: 0, kind: input, shape index: {}]
  %s1 = inlined_call_operand.vmem [shape: s32[8,1], index: 1, kind: input, shape index: {}]
  %s2 = inlined_call_operand.hbm [shape: f32[1,1], index: 2, kind: output, shape index: {}]
  %s3 = sld [smem:[#allocation0]]
  $region18: #{tpu_custom_call.1} parent=0
    _
  %s5 = ssub.s32 1, %s3
  %s6 = scalar_select 0, %s5, %s3
  $region1: #{tpu_custom_call.1} parent=0
    #allocation2 [shape = 'u8[512]{0}', space=smem, size = 0x200, scoped, tag = 'output window, operand 0, single buffered']
    #allocation3 [shape = 's32[1]{0}', space=sflag, size = 0x4, scoped, tag = 'scoped memory for tpu_custom_call.1']
    %7 = vsyncpa [#allocation3], 0
    // Predicated region
    $region2: #{tpu_custom_call.1} parent=1 // pred_check
      _
    $region3: #{tpu_custom_call.1} parent=1 // pred_check_branch
      %9 = sbr.rel (0) target = $region5
    $region4: #{tpu_custom_call.1} parent=1 // pred_region
      _
    $region5: #{tpu_custom_call.1} parent=1 // pred_fallthru
      _
    // Predicated region
    $region6: #{tpu_custom_call.1} parent=1 // pred_check
      _
    $region7: #{tpu_custom_call.1} parent=1 // pred_check_branch
      %11 = sbr.rel (0) target = $region9
    $region8: #{tpu_custom_call.1} parent=1 // pred_region
      _
    $region9: #{tpu_custom_call.1} parent=1 // pred_fallthru
      _
    %v12 = vld [vmem:[%s0] sm:$0xff]
    %v13 = vld [vmem:[%s1] sm:$0xff]
    %vm14 = vcmask 261120
    %v15 = vsel %vm14, %v12, -inf
    %16 = vmax.xlane.f32.xlu0 %v15
    %v17 = vpop.xlane.xlu0 %16
    %v18 = vsub.f32 %v12, %v17
    %v19 = vlaneseq
    %v20 = vand.u32 %v19, 127
    %21 = vset.pattern.permute.xlu0 0
    %22 = vperm.xlu0 %21, %v13
    %v23 = vpop.permute.xlu0 %22
    %vm24 = vcmp.eq.s32.totalorder %v20, %v23
    %v25 = vmul.f32 %v18, 1.442695
    %v26 = vpow.pop %v25
    %v27 = vsel %vm14, %v26, 0.0
    %28 = vadd.xlane.f32.xlu0 %v27
    %v29 = vpop.xlane.xlu0 %28
    %v30 = vsel %vm24, %v18, 0.0
    %v31 = vsel %vm14, %v30, 0.0
    %32 = vadd.xlane.f32.xlu0 %v31
    %v33 = vpop.xlane.xlu0 %32
    %v34 = vlog2.pop %v29
    %v35 = vmul.f32 %v34, 0.6931472
    %v36 = vsub.f32 %v35, %v33
    %v37 = vlaneseq
    %v38 = vshrl.u32 %v37, 7
    %s39 = smul.u32 0, 8
    %v40 = vstv %s39
    %v41 = vadd.s32 %v40, %v38
    %vm42 = vcmp.lt.s32.totalorder %v41, 8
    %v43 = vsel %vm42, %v36, 0.0
    %vm44 = vcmask 7168
    %v45 = vsel %vm44, %v43, 0.0
    %46 = vadd.xlane.f32.xlu0 %v45
    %v47 = vpop.xlane.xlu0 %46
    %v48 = vrot.slane %v47, 4
    %v49 = vadd.f32 %v47, %v48
    %v50 = vrot.slane %v49, 2
    %v51 = vadd.f32 %v49, %v50
    %v52 = vrot.slane %v51, 1
    %v53 = vadd.f32 %v51, %v52
    %s54 = vtos %v53
    %s55 = scalar_lea.smem [#allocation2], 0
    %56 = sst [smem:[%s55]] %s54
    // Predicated region
    $region10: #{tpu_custom_call.1} parent=1 // pred_check
      _
    $region11: #{tpu_custom_call.1} parent=1 // pred_check_branch
      %58 = sbr.rel (0) target = $region13
    $region12: #{tpu_custom_call.1} parent=1 // pred_region
      %s60 = ssub.s32 16, 16
      %61 = vsyncadd [#allocation3], %s60
      %64 = dma.smem_to_hbm [#allocation2], 16, %s2, [#allocation3]
    $region13: #{tpu_custom_call.1} parent=1 // pred_fallthru
      _
    // Predicated region
    $region14: #{tpu_custom_call.1} parent=1 // pred_check
      _
    $region15: #{tpu_custom_call.1} parent=1 // pred_check_branch
      %66 = sbr.rel (0) target = $region17
    $region16: #{tpu_custom_call.1} parent=1 // pred_region
      %67 = dma.done [#allocation3], 16
    $region17: #{tpu_custom_call.1} parent=1 // pred_fallthru
      _
    %68 = sfence
    %69 = vsyncpa [#allocation3], 1

</llo_original>
